<compile_context>
chip_gen: v7x
topology: tpu7x:2x2x1
jax: 0.10.0
libtpu: 0.0.40
codegen_flags: <defaults>
</compile_context>

<pallas_src>
import jax
import jax.numpy as jnp
from jax.experimental import pallas as pl
from jax.experimental.pallas import tpu as pltpu


def wbnet_kernel(x_ref, w1_ref, b1_ref, w2_ref, b2_ref, out_ref, wts_ref):
    # x_ref block: (1, C, T) — channels-first, spatial tile on the lane axis.
    x = x_ref[0]                                               # (C, T) f32

    # --- stand-in backbone head: per-pixel MLP (1x1 conv -> ReLU -> 1x1 conv) ---
    # Oriented so the big (spatial) dim sits on the 128-lane axis of the MXU/VPU.
    h = jnp.dot(w1_ref[...], x, preferred_element_type=jnp.float32) + b1_ref[...]
    h = jnp.maximum(h, 0.0)                                    # (hidden, T)
    logits = jnp.dot(w2_ref[...], h, preferred_element_type=jnp.float32) + b2_ref[...]

    # torch.clamp(weights, -1000, 1000)
    logits = jnp.clip(logits, -1000.0, 1000.0)                 # (G, T)

    # nn.Softmax(dim=1) (NCHW channel axis) == softmax over the group rows.
    # G is tiny & static: explicit row-wise max/sum keeps everything on the VPU
    # (no cross-lane/sublane XLU reductions); division goes to the EUP via the
    # approximate reciprocal, refined with Newton steps to full f32 accuracy.
    g = logits.shape[0]
    m = logits[0:1]
    for i in range(1, g):
        m = jnp.maximum(m, logits[i:i + 1])
    e = jnp.exp(logits - m)                                    # (G, T)
    denom = e[0:1]
    for i in range(1, g):
        denom = denom + e[i:i + 1]
    inv = pl.reciprocal(denom, approx=True)                    # EUP slot
    inv = inv * (2.0 - denom * inv)                            # Newton refinement
    inv = inv * (2.0 - denom * inv)
    weights = e * inv                                          # (G, T)
    wts_ref[0] = weights.astype(wts_ref.dtype)

    # out_img = sum_i weights[i] * x[3i:3i+3]  — pure VPU row multiply-adds.
    acc = weights[0:1] * x[0:3]
    for i in range(1, g):
        acc = acc + weights[i:i + 1] * x[3 * i:3 * i + 3]
    out_ref[0] = acc.astype(out_ref.dtype)


def _pick_tile_hw(hw, max_tile=4096):
    """Largest multiple-of-128 divisor of hw, capped at max_tile.

    Keeps the double-buffered VMEM footprint tiny (C * tile * 4B per buffer)
    on all of v5e / v6e / v7x while giving enough grid steps for the DMA
    pipeline to overlap with compute.
    """
    if hw <= 128 or hw % 128 != 0:
        return hw                      # fall back to full spatial extent
    best = 128
    t = 128
    while t <= min(hw, max_tile):
        if hw % t == 0:
            best = t
        t += 128
    return best


def wbnet_forward(x_nchw, params, tile_hw=None):
    """x_nchw: (B, C_in, H, W) float32 (NCHW, like the PyTorch module)."""
    B, C, H, W = x_nchw.shape
    assert C % 3 == 0
    n_groups = C // 3
    HW = H * W
    w1t, b1t, w2t, b2t = params        # transposed (channels-first) orientation
    hidden = w1t.shape[0]

    if tile_hw is None:
        tile_hw = _pick_tile_hw(HW)
    assert HW % tile_hw == 0
    n_tiles = HW // tile_hw

    # Channels-first flattened-spatial layout: plain reshape, no HBM transpose.
    x_flat = x_nchw.reshape(B, C, HW)

    cost = pl.CostEstimate(
        flops=2 * B * HW * (C * hidden + hidden * n_groups) + 10 * B * HW * n_groups,
        transcendentals=B * HW * n_groups,
        bytes_accessed=4 * B * HW * (C + 3 + n_groups),
    )

    out_img_flat, weights_flat = pl.pallas_call(
        wbnet_kernel,
        out_shape=(
            jax.ShapeDtypeStruct((B, 3, HW), x_nchw.dtype),
            jax.ShapeDtypeStruct((B, n_groups, HW), x_nchw.dtype),
        ),
        grid_spec=pltpu.PrefetchScalarGridSpec(
            num_scalar_prefetch=0,
            grid=(B, n_tiles),
            in_specs=[
                pl.BlockSpec((1, C, tile_hw), lambda b, t: (b, 0, t)),
                pl.BlockSpec((hidden, C), lambda b, t: (0, 0)),
                pl.BlockSpec((hidden, 1), lambda b, t: (0, 0)),
                pl.BlockSpec((n_groups, hidden), lambda b, t: (0, 0)),
                pl.BlockSpec((n_groups, 1), lambda b, t: (0, 0)),
            ],
            out_specs=[
                pl.BlockSpec((1, 3, tile_hw), lambda b, t: (b, 0, t)),
                pl.BlockSpec((1, n_groups, tile_hw), lambda b, t: (b, 0, t)),
            ],
        ),
        compiler_params=pltpu.CompilerParams(
            dimension_semantics=("parallel", "parallel")),  # both TCs on v7x
        cost_estimate=cost,
    )(x_flat, w1t, b1t, w2t, b2t)

    # Plain reshapes back to NCHW — no transposes needed.
    out_img = out_img_flat.reshape(B, 3, H, W)
    weights = weights_flat.reshape(B, n_groups, H, W)
    return out_img, weights


def make_params(inchnls=9, initialchnls=16):
    """Deterministic synthetic parameters for the stand-in backbone head
    (stored in channels-first / transposed orientation)."""
    n_groups = inchnls // 3
    k0, k1, k2, k3 = jax.random.split(jax.random.PRNGKey(42), 4)
    w1t = 0.1 * jax.random.normal(k0, (initialchnls, inchnls), jnp.float32)
    b1t = 0.01 * jax.random.normal(k1, (initialchnls, 1), jnp.float32)
    w2t = 0.1 * jax.random.normal(k2, (n_groups, initialchnls), jnp.float32)
    b2t = 0.01 * jax.random.normal(k3, (n_groups, 1), jnp.float32)
    return (w1t, b1t, w2t, b2t)


def reference_forward(x_nchw, params):
    """Pure-JAX reference of the same semantics (for a correctness check)."""
    w1t, b1t, w2t, b2t = params
    B, C, H, W = x_nchw.shape
    n_groups = C // 3
    x = x_nchw.reshape(B, C, H * W)                         # (B, C, HW)
    h = jnp.maximum(jnp.einsum('hc,bcp->bhp', w1t, x) + b1t[None], 0.0)
    logits = jnp.clip(jnp.einsum('gh,bhp->bgp', w2t, h) + b2t[None], -1000.0, 1000.0)
    weights = jax.nn.softmax(logits, axis=1)                # (B, G, HW)
    out = jnp.zeros((B, 3, H * W), jnp.float32)
    for i in range(n_groups):
        out = out + weights[:, i:i + 1] * x[:, 3 * i:3 * i + 3]
    return out.reshape(B, 3, H, W), weights.reshape(B, n_groups, H, W)


if __name__ == "__main__":
    B, C_in, H, W = 2, 9, 16, 16        # inchnls=9 -> 3 groups of 3 channels
    key = jax.random.PRNGKey(0)
    x = jax.random.uniform(key, (B, C_in, H, W), jnp.float32)

    params = make_params(inchnls=C_in, initialchnls=16)

    # tile_hw=128 -> grid (B, 2): exercises the 2-axis spatial tiling path.
    out_img, weights = wbnet_forward(x, params, tile_hw=128)
    out_img = jax.block_until_ready(out_img)
    weights = jax.block_until_ready(weights)

    ref_out, ref_w = reference_forward(x, params)
    assert out_img.shape == (B, 3, H, W)
    assert weights.shape == (B, C_in // 3, H, W)
    assert jnp.allclose(out_img, ref_out, atol=1e-5, rtol=1e-5)
    assert jnp.allclose(weights, ref_w, atol=1e-5, rtol=1e-5)

    print("KERNEL_OK")
</pallas_src>

<mosaic_0001>
module attributes {stable_mosaic.version = 11 : i64} {
  func.func @wbnet_kernel(%arg0: i32, %arg1: i32, %arg2: memref<1x9x128xf32, #tpu.memory_space<vmem>>, %arg3: memref<16x9xf32, #tpu.memory_space<vmem>>, %arg4: memref<16x1xf32, #tpu.memory_space<vmem>>, %arg5: memref<3x16xf32, #tpu.memory_space<vmem>>, %arg6: memref<3x1xf32, #tpu.memory_space<vmem>>, %arg7: memref<1x3x128xf32, #tpu.memory_space<vmem>>, %arg8: memref<1x3x128xf32, #tpu.memory_space<vmem>>) attributes {dimension_semantics = [#tpu.dimension_semantics<parallel>, #tpu.dimension_semantics<parallel>], iteration_bounds = array<i64: 2, 2>, scalar_prefetch = 0 : i64, scratch_operands = 0 : i64, tpu.core_type = #tpu.core_type<tc>, window_params = [{transform_indices = @transform_0, window_bounds = array<i64: 1, 9, 128>}, {pipeline_mode = #tpu.pipeline_mode<synchronous>, transform_indices = @transform_1, window_bounds = array<i64: 16, 9>}, {pipeline_mode = #tpu.pipeline_mode<synchronous>, transform_indices = @transform_2, window_bounds = array<i64: 16, 1>}, {pipeline_mode = #tpu.pipeline_mode<synchronous>, transform_indices = @transform_3, window_bounds = array<i64: 3, 16>}, {pipeline_mode = #tpu.pipeline_mode<synchronous>, transform_indices = @transform_4, window_bounds = array<i64: 3, 1>}, {transform_indices = @transform_5, window_bounds = array<i64: 1, 3, 128>}, {transform_indices = @transform_6, window_bounds = array<i64: 1, 3, 128>}]} {
    %c0 = arith.constant 0 : index
    %c0_0 = arith.constant 0 : index
    %c0_1 = arith.constant 0 : index
    %0 = vector.load %arg2[%c0, %c0_0, %c0_1] : memref<1x9x128xf32, #tpu.memory_space<vmem>>, vector<1x9x128xf32>
    %1 = vector.shape_cast %0 : vector<1x9x128xf32> to vector<9x128xf32>
    %c0_2 = arith.constant 0 : index
    %c0_3 = arith.constant 0 : index
    %2 = vector.load %arg3[%c0_2, %c0_3] : memref<16x9xf32, #tpu.memory_space<vmem>>, vector<16x9xf32>
    %cst = arith.constant dense<0.000000e+00> : vector<16x128xf32>
    %3 = tpu.matmul %2, %1, %cst {dimension_numbers = #tpu.dot_dimension_numbers<[1], [0], [0], [1], [0, 0, 1, 1], [], []>} : vector<16x9xf32>, vector<9x128xf32>, vector<16x128xf32> -> vector<16x128xf32>
    %c0_4 = arith.constant 0 : index
    %c0_5 = arith.constant 0 : index
    %4 = vector.load %arg4[%c0_4, %c0_5] : memref<16x1xf32, #tpu.memory_space<vmem>>, vector<16x1xf32>
    %5 = vector.broadcast %4 : vector<16x1xf32> to vector<16x128xf32>
    %6 = arith.addf %3, %5 : vector<16x128xf32>
    %cst_6 = arith.constant 0.000000e+00 : f32
    %7 = vector.broadcast %cst_6 : f32 to vector<16x128xf32>
    %8 = arith.maximumf %6, %7 : vector<16x128xf32>
    %c0_7 = arith.constant 0 : index
    %c0_8 = arith.constant 0 : index
    %9 = vector.load %arg5[%c0_7, %c0_8] : memref<3x16xf32, #tpu.memory_space<vmem>>, vector<3x16xf32>
    %cst_9 = arith.constant dense<0.000000e+00> : vector<3x128xf32>
    %10 = tpu.matmul %9, %8, %cst_9 {dimension_numbers = #tpu.dot_dimension_numbers<[1], [0], [0], [1], [0, 0, 1, 1], [], []>} : vector<3x16xf32>, vector<16x128xf32>, vector<3x128xf32> -> vector<3x128xf32>
    %c0_10 = arith.constant 0 : index
    %c0_11 = arith.constant 0 : index
    %11 = vector.load %arg6[%c0_10, %c0_11] : memref<3x1xf32, #tpu.memory_space<vmem>>, vector<3x1xf32>
    %12 = vector.broadcast %11 : vector<3x1xf32> to vector<3x128xf32>
    %13 = arith.addf %10, %12 : vector<3x128xf32>
    %cst_12 = arith.constant -1.000000e+03 : f32
    %cst_13 = arith.constant 1.000000e+03 : f32
    %14 = vector.broadcast %cst_12 : f32 to vector<3x128xf32>
    %15 = arith.maximumf %14, %13 : vector<3x128xf32>
    %16 = vector.broadcast %cst_13 : f32 to vector<3x128xf32>
    %17 = arith.minimumf %16, %15 : vector<3x128xf32>
    %18 = vector.extract_strided_slice %17 {offsets = [0, 0], sizes = [1, 128], strides = [1, 1]} : vector<3x128xf32> to vector<1x128xf32>
    %19 = vector.extract_strided_slice %17 {offsets = [1, 0], sizes = [1, 128], strides = [1, 1]} : vector<3x128xf32> to vector<1x128xf32>
    %20 = arith.maximumf %18, %19 : vector<1x128xf32>
    %21 = vector.extract_strided_slice %17 {offsets = [2, 0], sizes = [1, 128], strides = [1, 1]} : vector<3x128xf32> to vector<1x128xf32>
    %22 = arith.maximumf %20, %21 : vector<1x128xf32>
    %23 = vector.broadcast %22 : vector<1x128xf32> to vector<3x128xf32>
    %24 = arith.subf %17, %23 : vector<3x128xf32>
    %25 = math.exp %24 : vector<3x128xf32>
    %26 = vector.extract_strided_slice %25 {offsets = [0, 0], sizes = [1, 128], strides = [1, 1]} : vector<3x128xf32> to vector<1x128xf32>
    %27 = vector.extract_strided_slice %25 {offsets = [1, 0], sizes = [1, 128], strides = [1, 1]} : vector<3x128xf32> to vector<1x128xf32>
    %28 = arith.addf %26, %27 : vector<1x128xf32>
    %29 = vector.extract_strided_slice %25 {offsets = [2, 0], sizes = [1, 128], strides = [1, 1]} : vector<3x128xf32> to vector<1x128xf32>
    %30 = arith.addf %28, %29 : vector<1x128xf32>
    %31 = tpu.reciprocal %30 {approx = true} : vector<1x128xf32> -> vector<1x128xf32>
    %32 = arith.mulf %30, %31 : vector<1x128xf32>
    %cst_14 = arith.constant 2.000000e+00 : f32
    %33 = vector.broadcast %cst_14 : f32 to vector<1x128xf32>
    %34 = arith.subf %33, %32 : vector<1x128xf32>
    %35 = arith.mulf %31, %34 : vector<1x128xf32>
    %36 = arith.mulf %30, %35 : vector<1x128xf32>
    %cst_15 = arith.constant 2.000000e+00 : f32
    %37 = vector.broadcast %cst_15 : f32 to vector<1x128xf32>
    %38 = arith.subf %37, %36 : vector<1x128xf32>
    %39 = arith.mulf %35, %38 : vector<1x128xf32>
    %40 = vector.broadcast %39 : vector<1x128xf32> to vector<3x128xf32>
    %41 = arith.mulf %25, %40 : vector<3x128xf32>
    %c0_16 = arith.constant 0 : index
    %c0_17 = arith.constant 0 : index
    %c0_18 = arith.constant 0 : index
    %42 = vector.load %arg8[%c0_16, %c0_17, %c0_18] : memref<1x3x128xf32, #tpu.memory_space<vmem>>, vector<1x3x128xf32>
    %43 = vector.shape_cast %42 : vector<1x3x128xf32> to vector<3x128xf32>
    %44 = vector.shape_cast %41 : vector<3x128xf32> to vector<1x3x128xf32>
    tpu.vector_store %arg8[%c0_16, %c0_17, %c0_18], %44 {strides = array<i32>} : memref<1x3x128xf32, #tpu.memory_space<vmem>>, vector<1x3x128xf32>,
    %45 = vector.extract_strided_slice %41 {offsets = [0, 0], sizes = [1, 128], strides = [1, 1]} : vector<3x128xf32> to vector<1x128xf32>
    %46 = vector.extract_strided_slice %1 {offsets = [0, 0], sizes = [3, 128], strides = [1, 1]} : vector<9x128xf32> to vector<3x128xf32>
    %47 = vector.broadcast %45 : vector<1x128xf32> to vector<3x128xf32>
    %48 = arith.mulf %47, %46 : vector<3x128xf32>
    %49 = vector.extract_strided_slice %41 {offsets = [1, 0], sizes = [1, 128], strides = [1, 1]} : vector<3x128xf32> to vector<1x128xf32>
    %50 = vector.extract_strided_slice %1 {offsets = [3, 0], sizes = [3, 128], strides = [1, 1]} : vector<9x128xf32> to vector<3x128xf32>
    %51 = vector.broadcast %49 : vector<1x128xf32> to vector<3x128xf32>
    %52 = arith.mulf %51, %50 : vector<3x128xf32>
    %53 = arith.addf %48, %52 : vector<3x128xf32>
    %54 = vector.extract_strided_slice %41 {offsets = [2, 0], sizes = [1, 128], strides = [1, 1]} : vector<3x128xf32> to vector<1x128xf32>
    %55 = vector.extract_strided_slice %1 {offsets = [6, 0], sizes = [3, 128], strides = [1, 1]} : vector<9x128xf32> to vector<3x128xf32>
    %56 = vector.broadcast %54 : vector<1x128xf32> to vector<3x128xf32>
    %57 = arith.mulf %56, %55 : vector<3x128xf32>
    %58 = arith.addf %53, %57 : vector<3x128xf32>
    %c0_19 = arith.constant 0 : index
    %c0_20 = arith.constant 0 : index
    %c0_21 = arith.constant 0 : index
    %59 = vector.load %arg7[%c0_19, %c0_20, %c0_21] : memref<1x3x128xf32, #tpu.memory_space<vmem>>, vector<1x3x128xf32>
    %60 = vector.shape_cast %59 : vector<1x3x128xf32> to vector<3x128xf32>
    %61 = vector.shape_cast %58 : vector<3x128xf32> to vector<1x3x128xf32>
    tpu.vector_store %arg7[%c0_19, %c0_20, %c0_21], %61 {strides = array<i32>} : memref<1x3x128xf32, #tpu.memory_space<vmem>>, vector<1x3x128xf32>,
    return
  }
  func.func @transform_0(%arg0: i32, %arg1: i32) -> (i32, i32, i32) {
    %c0_i32 = arith.constant 0 : i32
    %c0_i32_0 = arith.constant 0 : i32
    return %arg0, %c0_i32, %arg1 : i32, i32, i32
  }
  func.func @transform_1(%arg0: i32, %arg1: i32) -> (i32, i32) {
    %c0_i32 = arith.constant 0 : i32
    %c0_i32_0 = arith.constant 0 : i32
    %c0_i32_1 = arith.constant 0 : i32
    return %c0_i32, %c0_i32_0 : i32, i32
  }
  func.func @transform_2(%arg0: i32, %arg1: i32) -> (i32, i32) {
    %c0_i32 = arith.constant 0 : i32
    %c0_i32_0 = arith.constant 0 : i32
    %c0_i32_1 = arith.constant 0 : i32
    return %c0_i32, %c0_i32_0 : i32, i32
  }
  func.func @transform_3(%arg0: i32, %arg1: i32) -> (i32, i32) {
    %c0_i32 = arith.constant 0 : i32
    %c0_i32_0 = arith.constant 0 : i32
    %c0_i32_1 = arith.constant 0 : i32
    return %c0_i32, %c0_i32_0 : i32, i32
  }
  func.func @transform_4(%arg0: i32, %arg1: i32) -> (i32, i32) {
    %c0_i32 = arith.constant 0 : i32
    %c0_i32_0 = arith.constant 0 : i32
    %c0_i32_1 = arith.constant 0 : i32
    return %c0_i32, %c0_i32_0 : i32, i32
  }
  func.func @transform_5(%arg0: i32, %arg1: i32) -> (i32, i32, i32) {
    %c0_i32 = arith.constant 0 : i32
    %c0_i32_0 = arith.constant 0 : i32
    return %arg0, %c0_i32, %arg1 : i32, i32, i32
  }
  func.func @transform_6(%arg0: i32, %arg1: i32) -> (i32, i32, i32) {
    %c0_i32 = arith.constant 0 : i32
    %c0_i32_0 = arith.constant 0 : i32
    return %arg0, %c0_i32, %arg1 : i32, i32, i32
  }
}

</mosaic_0001>

<llo_original>
// kernel: tpu_custom_call.1
$region0: #{tpu_custom_call.1}
  #allocation0 [shape = 'u32[]', space=smem, size = 0x4, offset = 0x4, fixed_abs, tag = 'smem constant byte address 0x4 - core index']
  #allocation1 [shape = 'u32[144,128]{1,0:T(1,128)}', space=vmem, size = 0x12000, scoped, tag = 'internal scratch']
  %s0 = inlined_call_operand.vmem [shape: f32[2,9,256], index: 0, kind: input, shape index: {}]
  %s1 = inlined_call_operand.vmem [shape: f32[16,9], index: 1, kind: input, shape index: {}]
  %s2 = inlined_call_operand.vmem [shape: f32[16,1], index: 2, kind: input, shape index: {}]
  %s3 = inlined_call_operand.vmem [shape: f32[3,16], index: 3, kind: input, shape index: {}]
  %s4 = inlined_call_operand.vmem [shape: f32[3,1], index: 4, kind: input, shape index: {}]
  %s5 = inlined_call_operand.vmem [shape: f32[2,3,256], index: 5, kind: output, shape index: {0}]
  %s6 = inlined_call_operand.vmem [shape: f32[2,3,256], index: 6, kind: output, shape index: {1}]
  %7 = xla_tuple %s5, %s6
  %s8 = sld [smem:[#allocation0]]
  $region99: #{tpu_custom_call.1} parent=0
    _
  %s10 = ssub.s32 1, %s8
  %s11 = scalar_select 0, %s10, %s8
  $region1: #{tpu_custom_call.1} parent=0
    #allocation2 [shape = 'u8[16384]{0}', space=vmem, size = 0x4000, scoped, tag = 'input window, operand 0']
    loop: start=0, step=1, limit=6
    $region2: #{tpu_custom_call.1} parent=1 // loop_pre_header
      _
    $region3: #{tpu_custom_call.1} parent=1 // loop_header
      %s13 = sphi 0, %s17
      %p14 = scmp.ge.s32.totalorder %s13, 6
      %s20 = sphi 0, %s32
      %s21 = sphi 0, %s28
      %s22 = sphi 0, %s20
      %s23 = sphi 0, %s21
      %s24 = sphi 0, %s22
      %s25 = sphi 0, %s23
      %s37 = sphi 0, %s39
      %s40 = sphi 0, %s37
      %s41 = sphi 0, %s40
      %s57 = sphi 0, %s41
      %s61 = sphi 0, %s61
      %s63 = sphi 0, %s61
      %s64 = sphi 0, %s63
      %s78 = sphi 0, %s64
      %s82 = sphi 0, %s82
      %s84 = sphi 0, %s82
      %s85 = sphi 0, %s84
      %s99 = sphi 0, %s85
      %s103 = sphi 0, %s103
      %s105 = sphi 0, %s103
      %s106 = sphi 0, %s105
      %s120 = sphi 0, %s106
      %s124 = sphi 0, %s124
      %s126 = sphi 0, %s124
      %s127 = sphi 0, %s126
      %s141 = sphi 0, %s127
      %s149 = sphi 0, %s151
      %s152 = sphi 0, %s149
      %s153 = sphi 0, %s152
      %s169 = sphi 0, %s153
      %s177 = sphi 0, %s179
      %s180 = sphi 0, %s177
      %s181 = sphi 0, %s180
      %s197 = sphi 0, %s181
    $region4: #{tpu_custom_call.1} parent=1 // loop_header_branch
      %16 = sbr.rel (%p14) target = $region8
    $region5: #{tpu_custom_call.1} parent=1 // loop_body
      %s18 = ssub.s32 %s13, 1
      %s19 = ssub.s32 %s13, 2
      %s26 = sadd.s32 1, %s21
      %p27 = scmp.ge.s32.totalorder %s26, 2
      %s28 = scalar_select %p27, 0, %s26
      %s29 = sadd.s32 1, %s20
      %s30 = scalar_select %p27, %s29, %s20
      %p31 = scmp.ge.s32.totalorder %s30, 2
      %s32 = scalar_select %p31, 0, %s30
      %s33 = ssub.s32 %s20, %s32
      %s34 = ssub.s32 %s21, %s28
      %s35 = sor.u32 %s33, %s34
      %p36 = scmp.eq.s32.totalorder %s35, 0
      %s38 = sadd.s32 %s37, 1
      %s39 = scalar_select %p36, %s37, %s38
      %p42 = pneg %p36
      %p43 = scmp.eq.s32.totalorder %s13, 3
      %p44 = por %p42, %p43
      %p45 = scmp.ne.s32.totalorder %s37, %s40
      %p46 = scmp.eq.s32.totalorder %s13, 0
      %p47 = por %p45, %p46
      %p48 = scmp.ne.s32.totalorder %s37, %s40
      %p49 = scmp.eq.s32.totalorder %s18, 3
      %p50 = por %p48, %p49
      %p51 = scmp.ne.s32.totalorder %s40, %s41
      %p52 = scmp.eq.s32.totalorder %s18, 0
      %p53 = por %p51, %p52
      %p54 = scmp.ne.s32.totalorder %s40, %s41
      %p55 = scmp.eq.s32.totalorder %s19, 3
      %p56 = por %p54, %p55
      %p58 = scmp.ne.s32.totalorder %s41, %s57
      %p59 = scmp.eq.s32.totalorder %s19, 0
      %p60 = por %p58, %p59
      %s62 = sadd.s32 %s61, 1
      %p65 = scmp.eq.s32.totalorder %s13, 3
      %p66 = scmp.ne.s32.totalorder %s61, %s63
      %p67 = scmp.eq.s32.totalorder %s13, 0
      %p68 = por %p66, %p67
      %p69 = scmp.ne.s32.totalorder %s61, %s63
      %p70 = scmp.eq.s32.totalorder %s18, 3
      %p71 = por %p69, %p70
      %p72 = scmp.ne.s32.totalorder %s63, %s64
      %p73 = scmp.eq.s32.totalorder %s18, 0
      %p74 = por %p72, %p73
      %p75 = scmp.ne.s32.totalorder %s63, %s64
      %p76 = scmp.eq.s32.totalorder %s19, 3
      %p77 = por %p75, %p76
      %p79 = scmp.ne.s32.totalorder %s64, %s78
      %p80 = scmp.eq.s32.totalorder %s19, 0
      %p81 = por %p79, %p80
      %s83 = sadd.s32 %s82, 1
      %p86 = scmp.eq.s32.totalorder %s13, 3
      %p87 = scmp.ne.s32.totalorder %s82, %s84
      %p88 = scmp.eq.s32.totalorder %s13, 0
      %p89 = por %p87, %p88
      %p90 = scmp.ne.s32.totalorder %s82, %s84
      %p91 = scmp.eq.s32.totalorder %s18, 3
      %p92 = por %p90, %p91
      %p93 = scmp.ne.s32.totalorder %s84, %s85
      %p94 = scmp.eq.s32.totalorder %s18, 0
      %p95 = por %p93, %p94
      %p96 = scmp.ne.s32.totalorder %s84, %s85
      %p97 = scmp.eq.s32.totalorder %s19, 3
      %p98 = por %p96, %p97
      %p100 = scmp.ne.s32.totalorder %s85, %s99
      %p101 = scmp.eq.s32.totalorder %s19, 0
      %p102 = por %p100, %p101
      %s104 = sadd.s32 %s103, 1
      %p107 = scmp.eq.s32.totalorder %s13, 3
      %p108 = scmp.ne.s32.totalorder %s103, %s105
      %p109 = scmp.eq.s32.totalorder %s13, 0
      %p110 = por %p108, %p109
      %p111 = scmp.ne.s32.totalorder %s103, %s105
      %p112 = scmp.eq.s32.totalorder %s18, 3
      %p113 = por %p111, %p112
      %p114 = scmp.ne.s32.totalorder %s105, %s106
      %p115 = scmp.eq.s32.totalorder %s18, 0
      %p116 = por %p114, %p115
      %p117 = scmp.ne.s32.totalorder %s105, %s106
      %p118 = scmp.eq.s32.totalorder %s19, 3
      %p119 = por %p117, %p118
      %p121 = scmp.ne.s32.totalorder %s106, %s120
      %p122 = scmp.eq.s32.totalorder %s19, 0
      %p123 = por %p121, %p122
      %s125 = sadd.s32 %s124, 1
      %p128 = scmp.eq.s32.totalorder %s13, 3
      %p129 = scmp.ne.s32.totalorder %s124, %s126
      %p130 = scmp.eq.s32.totalorder %s13, 0
      %p131 = por %p129, %p130
      %p132 = scmp.ne.s32.totalorder %s124, %s126
      %p133 = scmp.eq.s32.totalorder %s18, 3
      %p134 = por %p132, %p133
      %p135 = scmp.ne.s32.totalorder %s126, %s127
      %p136 = scmp.eq.s32.totalorder %s18, 0
      %p137 = por %p135, %p136
      %p138 = scmp.ne.s32.totalorder %s126, %s127
      %p139 = scmp.eq.s32.totalorder %s19, 3
      %p140 = por %p138, %p139
      %p142 = scmp.ne.s32.totalorder %s127, %s141
      %p143 = scmp.eq.s32.totalorder %s19, 0
      %p144 = por %p142, %p143
      %s145 = ssub.s32 %s20, %s32
      %s146 = ssub.s32 %s21, %s28
      %s147 = sor.u32 %s145, %s146
      %p148 = scmp.eq.s32.totalorder %s147, 0
      %s150 = sadd.s32 %s149, 1
      %s151 = scalar_select %p148, %s149, %s150
      %p154 = pneg %p148
      %p155 = scmp.eq.s32.totalorder %s13, 3
      %p156 = por %p154, %p155
      %p157 = scmp.ne.s32.totalorder %s149, %s152
      %p158 = scmp.eq.s32.totalorder %s13, 0
      %p159 = por %p157, %p158
      %p160 = scmp.ne.s32.totalorder %s149, %s152
      %p161 = scmp.eq.s32.totalorder %s18, 3
      %p162 = por %p160, %p161
      %p163 = scmp.ne.s32.totalorder %s152, %s153
      %p164 = scmp.eq.s32.totalorder %s18, 0
      %p165 = por %p163, %p164
      %p166 = scmp.ne.s32.totalorder %s152, %s153
      %p167 = scmp.eq.s32.totalorder %s19, 3
      %p168 = por %p166, %p167
      %p170 = scmp.ne.s32.totalorder %s153, %s169
      %p171 = scmp.eq.s32.totalorder %s19, 0
      %p172 = por %p170, %p171
      %s173 = ssub.s32 %s20, %s32
      %s174 = ssub.s32 %s21, %s28
      %s175 = sor.u32 %s173, %s174
      %p176 = scmp.eq.s32.totalorder %s175, 0
      %s178 = sadd.s32 %s177, 1
      %s179 = scalar_select %p176, %s177, %s178
      %p182 = pneg %p176
      %p183 = scmp.eq.s32.totalorder %s13, 3
      %p184 = por %p182, %p183
      %p185 = scmp.ne.s32.totalorder %s177, %s180
      %p186 = scmp.eq.s32.totalorder %s13, 0
      %p187 = por %p185, %p186
      %p188 = scmp.ne.s32.totalorder %s177, %s180
      %p189 = scmp.eq.s32.totalorder %s18, 3
      %p190 = por %p188, %p189
      %p191 = scmp.ne.s32.totalorder %s180, %s181
      %p192 = scmp.eq.s32.totalorder %s18, 0
      %p193 = por %p191, %p192
      %p194 = scmp.ne.s32.totalorder %s180, %s181
      %p195 = scmp.eq.s32.totalorder %s19, 3
      %p196 = por %p194, %p195
      %p198 = scmp.ne.s32.totalorder %s181, %s197
      %p199 = scmp.eq.s32.totalorder %s19, 0
      %p200 = por %p198, %p199
      %p201 = scmp.le.s32.totalorder 1, %s13
      %p202 = scmp.lt.s32.totalorder %s13, 5
      %p203 = pnand %p201, %p202
      %p204 = pneg %p203
      // Predicated region
      $region9: #{tpu_custom_call.1} parent=5 // pred_check
        _
      $region10: #{tpu_custom_call.1} parent=5 // pred_check_branch
        %206 = sbr.rel (%p203) target = $region12
      $region11: #{tpu_custom_call.1} parent=5 // pred_region
        %s207 = ssub.s32 %s13, 1
        // Predicated region
        $region13: #{tpu_custom_call.1} parent=11 // pred_check
          %p208 = pneg %p74
        $region14: #{tpu_custom_call.1} parent=11 // pred_check_branch
          %210 = sbr.rel (%p208) target = $region16
        $region15: #{tpu_custom_call.1} parent=11 // pred_region
          _
        $region16: #{tpu_custom_call.1} parent=11 // pred_fallthru
          _
        // Predicated region
        $region17: #{tpu_custom_call.1} parent=11 // pred_check
          %p211 = pneg %p95
        $region18: #{tpu_custom_call.1} parent=11 // pred_check_branch
          %213 = sbr.rel (%p211) target = $region20
        $region19: #{tpu_custom_call.1} parent=11 // pred_region
          _
        $region20: #{tpu_custom_call.1} parent=11 // pred_fallthru
          _
        // Predicated region
        $region21: #{tpu_custom_call.1} parent=11 // pred_check
          %p214 = pneg %p116
        $region22: #{tpu_custom_call.1} parent=11 // pred_check_branch
          %216 = sbr.rel (%p214) target = $region24
        $region23: #{tpu_custom_call.1} parent=11 // pred_region
          _
        $region24: #{tpu_custom_call.1} parent=11 // pred_fallthru
          _
        // Predicated region
        $region25: #{tpu_custom_call.1} parent=11 // pred_check
          %p217 = pneg %p137
        $region26: #{tpu_custom_call.1} parent=11 // pred_check_branch
          %219 = sbr.rel (%p217) target = $region28
        $region27: #{tpu_custom_call.1} parent=11 // pred_region
          _
        $region28: #{tpu_custom_call.1} parent=11 // pred_fallthru
          _
      $region12: #{tpu_custom_call.1} parent=5 // pred_fallthru
        _
      %p220 = scmp.lt.s32.totalorder %s13, 4
      // Predicated region
      $region29: #{tpu_custom_call.1} parent=5 // pred_check
        %p221 = pneg %p220
      $region30: #{tpu_custom_call.1} parent=5 // pred_check_branch
        %223 = sbr.rel (%p221) target = $region32
      $region31: #{tpu_custom_call.1} parent=5 // pred_region
        // Predicated region
        $region33: #{tpu_custom_call.1} parent=31 // pred_check
          %p224 = pneg %p47
        $region34: #{tpu_custom_call.1} parent=31 // pred_check_branch
          %226 = sbr.rel (%p224) target = $region36
        $region35: #{tpu_custom_call.1} parent=31 // pred_region
          %s227 = sand.u32 %s37, 1
          %s228 = sand.u32 %s37, 1
          %s229 = smul.addr %s228, 16
          %s230 = scalar_lea.vmem [#allocation2], %s229
          %s231 = smul.addr %s20, 4
          %s232 = sadd.s32 %s21, %s231
          %s233 = smul.addr %s232, 8
          %s234 = scalar_lea.vmem %s0, %s233
          // Predicated region
          $region37: #{tpu_custom_call.1} parent=35 // pred_check
            _
          $region38: #{tpu_custom_call.1} parent=35 // pred_check_branch
            %236 = sbr.rel (0) target = $region40
          $region39: #{tpu_custom_call.1} parent=35 // pred_region
            // Predicated region
            $region41: #{tpu_custom_call.1} parent=39 // pred_check
              _
            $region42: #{tpu_custom_call.1} parent=39 // pred_check_branch
              %238 = sbr.rel (0) target = $region44
            $region43: #{tpu_custom_call.1} parent=39 // pred_region
              // Predicated region
              $region56: #{tpu_custom_call.1} parent=43 // pred_check
                _
              $region57: #{tpu_custom_call.1} parent=43 // pred_check_branch
                %255 = sbr.rel (0) target = $region59
              $region58: #{tpu_custom_call.1} parent=43 // pred_region
                loop: start=0, step=1, limit=1
                $region60: #{tpu_custom_call.1} parent=58 // loop_pre_header
                  _
                $region61: #{tpu_custom_call.1} parent=58 // loop_header
                  %s257 = sphi 0, %s261
                  %p258 = scmp.ge.s32.totalorder %s257, 1
                  %s262 = sphi %s234, %s234
                  %s263 = sphi %s230, %s230
                $region62: #{tpu_custom_call.1} parent=58 // loop_header_branch
                  %260 = sbr.rel (%p258) target = $region66
                $region63: #{tpu_custom_call.1} parent=58 // loop_body
                  %v264 = vld [vmem:[%s262] sm:$0xff]
                  %265 = vst [vmem:[%s263] sm:$0xff] %v264
                  %v266 = vld [vmem:[%s262 + $0x10] sm:$0xff]
                  %267 = vst [vmem:[%s263 + $0x8] sm:$0xff] %v266
                $region64: #{tpu_custom_call.1} parent=58 // loop_footer
                  %s261 = sadd.s32 1, %s257
                $region65: #{tpu_custom_call.1} parent=58 // loop_footer_branch
                  %256 = sbr.rel target = $region61
                $region66: #{tpu_custom_call.1} parent=58 // loop_exit
                  _
              $region59: #{tpu_custom_call.1} parent=43 // pred_fallthru
                _
              // Predicated region
              $region67: #{tpu_custom_call.1} parent=43 // pred_check
                _
              $region68: #{tpu_custom_call.1} parent=43 // pred_check_branch
                %269 = sbr.rel target = $region70
              $region69: #{tpu_custom_call.1} parent=43 // pred_region
                _
              $region70: #{tpu_custom_call.1} parent=43 // pred_fallthru
                _
            $region44: #{tpu_custom_call.1} parent=39 // pred_fallthru
              _
            // Predicated region
            $region45: #{tpu_custom_call.1} parent=39 // pred_check
              _
            $region46: #{tpu_custom_call.1} parent=39 // pred_check_branch
              %240 = sbr.rel target = $region48
            $region47: #{tpu_custom_call.1} parent=39 // pred_region
              loop: start=0, step=1, limit=1
              $region49: #{tpu_custom_call.1} parent=47 // loop_pre_header
                _
              $region50: #{tpu_custom_call.1} parent=47 // loop_header
                %s243 = sphi 0, %s247
                %p244 = scmp.ge.s32.totalorder %s243, 1
                %s248 = sphi %s234, %s234
                %s249 = sphi %s230, %s230
              $region51: #{tpu_custom_call.1} parent=47 // loop_header_branch
                %246 = sbr.rel (%p244) target = $region55
              $region52: #{tpu_custom_call.1} parent=47 // loop_body
                %v250 = vld [vmem:[%s248] sm:$0xff]
                %251 = vst [vmem:[%s249] sm:$0xff] %v250
                %v252 = vld [vmem:[%s248 + $0x10] sm:$0xff]
                %253 = vst [vmem:[%s249 + $0x8] sm:$0xff] %v252
              $region53: #{tpu_custom_call.1} parent=47 // loop_footer
                %s247 = sadd.s32 1, %s243
              $region54: #{tpu_custom_call.1} parent=47 // loop_footer_branch
                %242 = sbr.rel target = $region50
              $region55: #{tpu_custom_call.1} parent=47 // loop_exit
                _
            $region48: #{tpu_custom_call.1} parent=39 // pred_fallthru
              _
          $region40: #{tpu_custom_call.1} parent=35 // pred_fallthru
            _
          %270 = vnop
        $region36: #{tpu_custom_call.1} parent=31 // pred_fallthru
          _
      $region32: #{tpu_custom_call.1} parent=5 // pred_fallthru
        _
      %p271 = scmp.le.s32.totalorder 1, %s13
      %p272 = scmp.lt.s32.totalorder %s13, 5
      %p273 = pnand %p271, %p272
      %p274 = pneg %p273
      // Predicated region
      $region71: #{tpu_custom_call.1} parent=5 // pred_check
        _
      $region72: #{tpu_custom_call.1} parent=5 // pred_check_branch
        %276 = sbr.rel (%p273) target = $region74
      $region73: #{tpu_custom_call.1} parent=5 // pred_region
        %s277 = ssub.s32 %s13, 1
        %s278 = sand.u32 %s40, 1
        %s279 = sand.u32 %s40, 1
        %s280 = smul.addr %s279, 16
        %s281 = scalar_lea.vmem [#allocation2], %s280
        // Predicated region
        $region75: #{tpu_custom_call.1} parent=73 // pred_check
          %p282 = pneg %p53
        $region76: #{tpu_custom_call.1} parent=73 // pred_check_branch
          %284 = sbr.rel (%p282) target = $region78
        $region77: #{tpu_custom_call.1} parent=73 // pred_region
          _
        $region78: #{tpu_custom_call.1} parent=73 // pred_fallthru
          _
        %s285 = sand.u32 %s40, 1
        %s286 = sand.u32 %s40, 1
        %s287 = smul.addr %s286, 16
        %s288 = scalar_lea.vmem [#allocation2], %s287
        %p289 = pneg %p53
        %p290 = pneg %p50
        %p291 = pneg %p74
        %p292 = pneg %p71
        %p293 = pneg %p95
        %p294 = pneg %p92
        %p295 = pneg %p116
        %p296 = pneg %p113
        %p297 = pneg %p137
        %p298 = pneg %p134
        %p299 = pneg %p165
        %p300 = pneg %p162
        %p301 = scmp.lt.s32.totalorder %s22, 1
        %s302 = scalar_select %p301, %s22, 1
        %p303 = scmp.lt.s32.totalorder %s23, 1
        %s304 = scalar_select %p303, %s23, 1
        %s305 = smul.addr %s302, 2
        %s306 = sadd.s32 %s304, %s305
        %s307 = smul.addr %s306, 4
        %s308 = scalar_lea.vmem %s5, %s307
        %p309 = pneg %p193
        %p310 = pneg %p190
        %p311 = scmp.lt.s32.totalorder %s22, 1
        %s312 = scalar_select %p311, %s22, 1
        %p313 = scmp.lt.s32.totalorder %s23, 1
        %s314 = scalar_select %p313, %s23, 1
        %s315 = smul.addr %s312, 2
        %s316 = sadd.s32 %s314, %s315
        %s317 = smul.addr %s316, 4
        %s318 = scalar_lea.vmem %s6, %s317
        %p319 = scmp.lt.s32.totalorder %s22, 1
        %s320 = scalar_select %p319, %s22, 1
        %p321 = scmp.lt.s32.totalorder %s23, 1
        %s322 = scalar_select %p321, %s23, 1
        %s323 = smul.addr %s320, 2
        %s324 = sadd.s32 %s322, %s323
        %s325 = smul.addr %s324, 4
        %s326 = scalar_lea.vmem %s5, %s325
        %p327 = scmp.lt.s32.totalorder %s22, 1
        %s328 = scalar_select %p327, %s22, 1
        %p329 = scmp.lt.s32.totalorder %s23, 1
        %s330 = scalar_select %p329, %s23, 1
        %s331 = smul.addr %s328, 2
        %s332 = sadd.s32 %s330, %s331
        %s333 = smul.addr %s332, 4
        %s334 = scalar_lea.vmem %s6, %s333
        %v335 = vld [vmem:[%s281] sm:$0xff]
        %v336 = vld [vmem:[%s281 + $0x8] sm:$0x1]
        %v337 = vld [vmem:[%s1] sm:$0xff]
        %v338 = vld [vmem:[%s1 + $0x8] sm:$0xff]
        %v339 = vld [vmem:[%s2] sm:$0xff]
        %v340 = vld [vmem:[%s2 + $0x8] sm:$0xff]
        %342 = vset.pattern.permute.xlu0 0
        %343 = vperm.xlu0 %342, %v339
        %v344 = vpop.permute.xlu0 %343
        %347 = vset.pattern.permute.xlu0 0
        %348 = vperm.xlu0 %347, %v340
        %v349 = vpop.permute.xlu0 %348
        %vm351 = vcmask 72704
        %v353 = vsel %vm351, %v337, 0
        %v356 = vsel %vm351, %v338, 0
        %vm358 = vcmask 1040384
        %v360 = vsel %vm358, %v336, 0
        %362 = vmatprep.subr.mxu0 0.0
        %363 = vmatpush1.msra.mxu0 %v335
        %364 = vmatprep.subr.mxu0 0.0
        %365 = vmatpush1.msra.mxu0 %v360
        %366 = vmatprep.subr.mxu0 0.0
        %367 = vmatpush1.msra.mxu0 0.0
        %368 = vmatprep.subr.mxu0 0.0
        %369 = vmatpush1.msra.mxu0 0.0
        %370 = vmatprep.subr.mxu0 0.0
        %371 = vmatpush1.msra.mxu0 0.0
        %372 = vmatprep.subr.mxu0 0.0
        %373 = vmatpush1.msra.mxu0 0.0
        %374 = vmatprep.subr.mxu0 0.0
        %375 = vmatpush1.msra.mxu0 0.0
        %376 = vmatprep.subr.mxu0 0.0
        %377 = vmatpush1.msra.mxu0 0.0
        %378 = vmatprep.subr.mxu0 0.0
        %379 = vmatpush1.msra.mxu0 0.0
        %380 = vmatprep.subr.mxu0 0.0
        %381 = vmatpush1.msra.mxu0 0.0
        %382 = vmatprep.subr.mxu0 0.0
        %383 = vmatpush1.msra.mxu0 0.0
        %384 = vmatprep.subr.mxu0 0.0
        %385 = vmatpush1.msra.mxu0 0.0
        %386 = vmatprep.subr.mxu0 0.0
        %387 = vmatpush1.msra.mxu0 0.0
        %388 = vmatprep.subr.mxu0 0.0
        %389 = vmatpush1.msra.mxu0 0.0
        %390 = vmatprep.subr.mxu0 0.0
        %391 = vmatpush1.msra.mxu0 0.0
        %392 = vmatprep.subr.mxu0 0.0
        %393 = vmatpush1.msra.mxu0 0.0
        %394 = vmatprep.subr.mxu0 0.0
        %395 = vmatpush1.msra.mxu0 0.0
        %396 = vmatprep.subr.mxu0 0.0
        %397 = vmatpush1.msra.mxu0 0.0
        %398 = vmatprep.subr.mxu0 0.0
        %399 = vmatpush1.msra.mxu0 0.0
        %400 = vmatprep.subr.mxu0 0.0
        %401 = vmatpush1.msra.mxu0 0.0
        %402 = vmatprep.subr.mxu0 0.0
        %403 = vmatpush1.msra.mxu0 0.0
        %404 = vmatprep.subr.mxu0 0.0
        %405 = vmatpush1.msra.mxu0 0.0
        %406 = vmatprep.subr.mxu0 0.0
        %407 = vmatpush1.msra.mxu0 0.0
        %408 = vmatprep.subr.mxu0 0.0
        %409 = vmatpush1.msra.mxu0 0.0
        %410 = vmatprep.subr.mxu0 0.0
        %411 = vmatpush1.msra.mxu0 0.0
        %412 = vmatprep.subr.mxu0 0.0
        %413 = vmatpush1.msra.mxu0 0.0
        %414 = vmatprep.subr.mxu0 0.0
        %415 = vmatpush1.msra.mxu0 0.0
        %416 = vmatprep.subr.mxu0 0.0
        %417 = vmatpush1.msra.mxu0 0.0
        %418 = vmatprep.subr.mxu0 0.0
        %419 = vmatpush1.msra.mxu0 0.0
        %420 = vmatprep.subr.mxu0 0.0
        %421 = vmatpush1.msra.mxu0 0.0
        %422 = vmatprep.subr.mxu0 0.0
        %423 = vmatpush1.msra.mxu0 0.0
        %424 = vmatprep.subr.mxu0 0.0
        %425 = vmatpush1.msra.mxu0 0.0
        %426 = vmatprep.mubr.f32.mxu0 0.0
        %427 = vmatmul.mubr.f32.gmra.mrb[0].mxu0 %v353
        %v428 = vpop.f32.mrb[0].mxu0
        %v429 = vadd.f32 %v344, %v428
        %v430 = vpop.f32.mrb[0].mxu0
        %431 = vmatprep.mubr.f32.mxu0 0.0
        %432 = vmatmul.mubr.f32.gmra.mrb[0].mxu0 %v356
        %v433 = vpop.f32.mrb[0].mxu0
        %v434 = vadd.f32 %v349, %v433
        %v435 = vpop.f32.mrb[0].mxu0
        %436 = vdwg.mxu0
        %v437 = vmax.f32 %v429, 0.0
        %v438 = vmax.f32 %v434, 0.0
        %v439 = vld [vmem:[%s3] sm:$0x7]
        %v440 = vld [vmem:[%s4] sm:$0x7]
        %442 = vset.pattern.permute.xlu0 0
        %443 = vperm.xlu0 %442, %v440
        %v444 = vpop.permute.xlu0 %443
        %vm446 = vcmask 130048
        %v448 = vsel %vm446, %v439, 0
        %450 = vmatprep.subr.mxu0 0.0
        %451 = vmatpush1.msra.mxu0 %v437
        %452 = vmatprep.subr.mxu0 0.0
        %453 = vmatpush1.msra.mxu0 %v438
        %454 = vmatprep.subr.mxu0 0.0
        %455 = vmatpush1.msra.mxu0 0.0
        %456 = vmatprep.subr.mxu0 0.0
        %457 = vmatpush1.msra.mxu0 0.0
        %458 = vmatprep.subr.mxu0 0.0
        %459 = vmatpush1.msra.mxu0 0.0
        %460 = vmatprep.subr.mxu0 0.0
        %461 = vmatpush1.msra.mxu0 0.0
        %462 = vmatprep.subr.mxu0 0.0
        %463 = vmatpush1.msra.mxu0 0.0
        %464 = vmatprep.subr.mxu0 0.0
        %465 = vmatpush1.msra.mxu0 0.0
        %466 = vmatprep.subr.mxu0 0.0
        %467 = vmatpush1.msra.mxu0 0.0
        %468 = vmatprep.subr.mxu0 0.0
        %469 = vmatpush1.msra.mxu0 0.0
        %470 = vmatprep.subr.mxu0 0.0
        %471 = vmatpush1.msra.mxu0 0.0
        %472 = vmatprep.subr.mxu0 0.0
        %473 = vmatpush1.msra.mxu0 0.0
        %474 = vmatprep.subr.mxu0 0.0
        %475 = vmatpush1.msra.mxu0 0.0
        %476 = vmatprep.subr.mxu0 0.0
        %477 = vmatpush1.msra.mxu0 0.0
        %478 = vmatprep.subr.mxu0 0.0
        %479 = vmatpush1.msra.mxu0 0.0
        %480 = vmatprep.subr.mxu0 0.0
        %481 = vmatpush1.msra.mxu0 0.0
        %482 = vmatprep.subr.mxu0 0.0
        %483 = vmatpush1.msra.mxu0 0.0
        %484 = vmatprep.subr.mxu0 0.0
        %485 = vmatpush1.msra.mxu0 0.0
        %486 = vmatprep.subr.mxu0 0.0
        %487 = vmatpush1.msra.mxu0 0.0
        %488 = vmatprep.subr.mxu0 0.0
        %489 = vmatpush1.msra.mxu0 0.0
        %490 = vmatprep.subr.mxu0 0.0
        %491 = vmatpush1.msra.mxu0 0.0
        %492 = vmatprep.subr.mxu0 0.0
        %493 = vmatpush1.msra.mxu0 0.0
        %494 = vmatprep.subr.mxu0 0.0
        %495 = vmatpush1.msra.mxu0 0.0
        %496 = vmatprep.subr.mxu0 0.0
        %497 = vmatpush1.msra.mxu0 0.0
        %498 = vmatprep.subr.mxu0 0.0
        %499 = vmatpush1.msra.mxu0 0.0
        %500 = vmatprep.subr.mxu0 0.0
        %501 = vmatpush1.msra.mxu0 0.0
        %502 = vmatprep.subr.mxu0 0.0
        %503 = vmatpush1.msra.mxu0 0.0
        %504 = vmatprep.subr.mxu0 0.0
        %505 = vmatpush1.msra.mxu0 0.0
        %506 = vmatprep.subr.mxu0 0.0
        %507 = vmatpush1.msra.mxu0 0.0
        %508 = vmatprep.subr.mxu0 0.0
        %509 = vmatpush1.msra.mxu0 0.0
        %510 = vmatprep.subr.mxu0 0.0
        %511 = vmatpush1.msra.mxu0 0.0
        %512 = vmatprep.subr.mxu0 0.0
        %513 = vmatpush1.msra.mxu0 0.0
        %514 = vmatprep.mubr.f32.mxu0 0.0
        %515 = vmatmul.mubr.f32.gmra.mrb[0].mxu0 %v448
        %v516 = vpop.f32.mrb[0].mxu0
        %v517 = vadd.f32 %v444, %v516
        %v518 = vpop.f32.mrb[0].mxu0
        %519 = vdwg.mxu0
        %v520 = vmax.f32 %v517, -1000.0
        %v521 = vmin.f32 %v520, 1000.0
        %v523 = vrot.slane %v521, 1
        %v525 = vmax.f32 %v521, %v523
        %v526 = vrot.slane %v521, 2
        %v528 = vmax.f32 %v525, %v526
        %v529 = vlaneseq
        %v530 = vshrl.u32 %v529, 7
        %v531 = vsub.s32 0, %v530
        %v532 = vrot.slane %v528, %v531
        %v533 = vsub.f32 %v521, %v532
        %v534 = vmul.f32 %v533, 1.442695
        %v535 = vpow.pop %v534
        %v537 = vrot.slane %v535, 1
        %v539 = vadd.f32 %v535, %v537
        %v540 = vrot.slane %v535, 2
        %v542 = vadd.f32 %v539, %v540
        %v543 = vrcp.pop %v542
        %v544 = vmul.f32 %v542, %v543
        %v545 = vsub.f32 2.0, %v544
        %v546 = vmul.f32 %v543, %v545
        %v547 = vmul.f32 %v542, %v546
        %v548 = vsub.f32 2.0, %v547
        %v549 = vmul.f32 %v546, %v548
        %v550 = vlaneseq
        %v551 = vshrl.u32 %v550, 7
        %v552 = vsub.s32 0, %v551
        %v553 = vrot.slane %v549, %v552
        %v554 = vmul.f32 %v535, %v553
        %555 = vst [vmem:[%s334] sm:$0x7] %v554
        %v556 = vlaneseq
        %v557 = vshrl.u32 %v556, 7
        %v558 = vsub.s32 0, %v557
        %v559 = vrot.slane %v554, %v558
        %v560 = vmul.f32 %v559, %v335
        %v561 = vlaneseq
        %v562 = vshrl.u32 %v561, 7
        %v563 = vsub.s32 1, %v562
        %v564 = vrot.slane %v554, %v563
        %v565 = vmul.f32 %v564, %v335
        %v567 = vrot.slane %v565, 3
        %v569 = vadd.f32 %v560, %v567
        %v570 = vlaneseq
        %v571 = vshrl.u32 %v570, 7
        %v572 = vsub.s32 2, %v571
        %v573 = vrot.slane %v554, %v572
        %v574 = vmul.f32 %v573, %v335
        %v575 = vmul.f32 %v573, %v336
        %vm578 = vcmask 1041408
        %v579 = vrot.slane %v574, 6
        %v580 = vrot.slane %v575, 6
        %v581 = vsel %vm578, %v579, %v580
        %v583 = vadd.f32 %v569, %v581
        %584 = vst [vmem:[%s326] sm:$0x7] %v583
        %p585 = scmp.lt.s32.totalorder %s22, 1
        %s586 = scalar_select %p585, %s22, 1
        %p587 = scmp.lt.s32.totalorder %s23, 1
        %s588 = scalar_select %p587, %s23, 1
        %s589 = smul.addr %s586, 2
        %s590 = sadd.s32 %s588, %s589
        %s591 = smul.addr %s590, 4
        %s592 = scalar_lea.vmem %s5, %s591
        %p593 = scmp.lt.s32.totalorder %s22, 1
        %s594 = scalar_select %p593, %s22, 1
        %p595 = scmp.lt.s32.totalorder %s23, 1
        %s596 = scalar_select %p595, %s23, 1
        %s597 = smul.addr %s594, 2
        %s598 = sadd.s32 %s596, %s597
        %s599 = smul.addr %s598, 4
        %s600 = scalar_lea.vmem %s6, %s599
        // Predicated region
        $region79: #{tpu_custom_call.1} parent=73 // pred_check
          %p601 = pneg %p162
        $region80: #{tpu_custom_call.1} parent=73 // pred_check_branch
          %603 = sbr.rel (%p601) target = $region82
        $region81: #{tpu_custom_call.1} parent=73 // pred_region
          _
        $region82: #{tpu_custom_call.1} parent=73 // pred_fallthru
          _
        // Predicated region
        $region83: #{tpu_custom_call.1} parent=73 // pred_check
          %p604 = pneg %p190
        $region84: #{tpu_custom_call.1} parent=73 // pred_check_branch
          %606 = sbr.rel (%p604) target = $region86
        $region85: #{tpu_custom_call.1} parent=73 // pred_region
          _
        $region86: #{tpu_custom_call.1} parent=73 // pred_fallthru
          _
      $region74: #{tpu_custom_call.1} parent=5 // pred_fallthru
        _
      %p607 = scmp.le.s32.totalorder 2, %s13
      // Predicated region
      $region87: #{tpu_custom_call.1} parent=5 // pred_check
        %p608 = pneg %p607
      $region88: #{tpu_custom_call.1} parent=5 // pred_check_branch
        %610 = sbr.rel (%p608) target = $region90
      $region89: #{tpu_custom_call.1} parent=5 // pred_region
        %s611 = ssub.s32 %s13, 2
        // Predicated region
        $region91: #{tpu_custom_call.1} parent=89 // pred_check
          %p612 = pneg %p168
        $region92: #{tpu_custom_call.1} parent=89 // pred_check_branch
          %614 = sbr.rel (%p612) target = $region94
        $region93: #{tpu_custom_call.1} parent=89 // pred_region
          %p615 = scmp.lt.s32.totalorder %s24, 1
          %s616 = scalar_select %p615, %s24, 1
          %p617 = scmp.lt.s32.totalorder %s25, 1
          %s618 = scalar_select %p617, %s25, 1
          %s619 = smul.addr %s616, 2
          %s620 = sadd.s32 %s618, %s619
          %s621 = smul.addr %s620, 4
          %s622 = scalar_lea.vmem %s5, %s621
        $region94: #{tpu_custom_call.1} parent=89 // pred_fallthru
          _
        // Predicated region
        $region95: #{tpu_custom_call.1} parent=89 // pred_check
          %p623 = pneg %p196
        $region96: #{tpu_custom_call.1} parent=89 // pred_check_branch
          %625 = sbr.rel (%p623) target = $region98
        $region97: #{tpu_custom_call.1} parent=89 // pred_region
          %p626 = scmp.lt.s32.totalorder %s24, 1
          %s627 = scalar_select %p626, %s24, 1
          %p628 = scmp.lt.s32.totalorder %s25, 1
          %s629 = scalar_select %p628, %s25, 1
          %s630 = smul.addr %s627, 2
          %s631 = sadd.s32 %s629, %s630
          %s632 = smul.addr %s631, 4
          %s633 = scalar_lea.vmem %s6, %s632
        $region98: #{tpu_custom_call.1} parent=89 // pred_fallthru
          _
      $region90: #{tpu_custom_call.1} parent=5 // pred_fallthru
        _
    $region6: #{tpu_custom_call.1} parent=1 // loop_footer
      %s17 = sadd.s32 1, %s13
    $region7: #{tpu_custom_call.1} parent=1 // loop_footer_branch
      %12 = sbr.rel target = $region3
    $region8: #{tpu_custom_call.1} parent=1 // loop_exit
      _

</llo_original>
